<compile_context>
chip_gen: v7x
topology: tpu7x:2x2x1
jax: 0.10.0
libtpu: 0.0.40
codegen_flags: <defaults>
</compile_context>

<pallas_src>
import math

import jax
import jax.numpy as jnp
from jax.experimental import pallas as pl
from jax.experimental.pallas import tpu as pltpu


def _round_up(x, m):
    return ((x + m - 1) // m) * m


def _make_kernel(scalar_out: bool):
    """scalar_out=True -> out_dim == 1: final layer as VPU multiply + lane reduce."""

    def kernel(s_ref, a_ref,
               w1t_ref, b1_ref,
               w2xt_ref, w2at_ref, b2_ref,
               w3_ref, b3_ref,
               out_ref):
        # dense1 + relu : (TILE_B, IN) @ (IN, H) -> (TILE_B, H)
        x = jnp.dot(s_ref[...], w1t_ref[...], preferred_element_type=jnp.float32)
        x = jnp.maximum(x + b1_ref[...], 0.0)

        # hidden2 over concat([x, actions]) as split matmul, + relu -> (TILE_B, H)
        h = (jnp.dot(x.astype(w2xt_ref.dtype), w2xt_ref[...],
                     preferred_element_type=jnp.float32)
             + jnp.dot(a_ref[...], w2at_ref[...], preferred_element_type=jnp.float32)
             + b2_ref[...])
        h = jnp.maximum(h, 0.0)

        # output layer -> (TILE_B, OUT)
        if scalar_out:
            # out_dim == 1: keep it off the MXU (VPU multiply + XLU lane reduce)
            q = jnp.sum(h * w3_ref[...], axis=1, keepdims=True)
        else:
            q = jnp.dot(h.astype(w3_ref.dtype), w3_ref[...],
                        preferred_element_type=jnp.float32)
        out_ref[...] = (q + b3_ref[...]).astype(out_ref.dtype)

    return kernel


def critic_forward(states, actions, params, *, tile_b=None,
                   matmul_dtype=jnp.float32):
    """states: [B, input], actions: [B, action_dim] -> [B, output_q_value].

    Params are in PyTorch nn.Linear layout:
      w1: (H, IN)  b1: (H,)   w2: (H, H+A)  b2: (H,)   w3: (OUT, H)  b3: (OUT,)
    """
    w1, b1, w2, b2, w3, b3 = (params["w1"], params["b1"], params["w2"],
                              params["b2"], params["w3"], params["b3"])
    B, IN = states.shape
    A = actions.shape[1]
    H = w1.shape[0]
    OUT = w3.shape[0]

    # --- batch tiling (sublane axis); pad B only if it is not a tile multiple -----
    if tile_b is None:
        tile_b = min(1024, _round_up(max(B, 1), 128))
    B_pad = _round_up(B, tile_b)
    grid_n = B_pad // tile_b

    s = states.astype(matmul_dtype)
    a = actions.astype(matmul_dtype)
    if B_pad != B:
        s = jnp.pad(s, ((0, B_pad - B), (0, 0)))
        a = jnp.pad(a, ((0, B_pad - B), (0, 0)))

    # Tiny weights pre-transposed once so every in-kernel matmul is natural (M,K)x(K,N).
    w1t = jnp.transpose(w1).astype(matmul_dtype)           # (IN, H)
    w2xt = jnp.transpose(w2[:, :H]).astype(matmul_dtype)   # (H,  H)   applied to x
    w2at = jnp.transpose(w2[:, H:]).astype(matmul_dtype)   # (A,  H)   applied to actions
    b1r = b1.reshape(1, H).astype(jnp.float32)
    b2r = b2.reshape(1, H).astype(jnp.float32)
    b3r = b3.reshape(1, OUT).astype(jnp.float32)

    scalar_out = (OUT == 1)
    if scalar_out:
        w3_arg = w3.reshape(1, H).astype(jnp.float32)       # row vector, VPU path
    else:
        w3_arg = jnp.transpose(w3).astype(matmul_dtype)     # (H, OUT), MXU path

    # --- specs --------------------------------------------------------------------
    stream = lambda cols: pl.BlockSpec((tile_b, cols), lambda i: (i, 0))
    resident = lambda arr: pl.BlockSpec(arr.shape, lambda i: (0, 0))

    in_specs = [
        stream(IN),            # states
        stream(A),             # actions
        resident(w1t),         # W1^T
        resident(b1r),         # b1
        resident(w2xt),        # W2x^T
        resident(w2at),        # W2a^T
        resident(b2r),         # b2
        resident(w3_arg),      # W3 (row) or W3^T
        resident(b3r),         # b3
    ]
    out_specs = pl.BlockSpec((tile_b, OUT), lambda i: (i, 0))

    itemsize = jnp.dtype(matmul_dtype).itemsize
    cost = pl.CostEstimate(
        flops=2 * B_pad * (IN * H + (H + A) * H + H * OUT),
        transcendentals=0,
        bytes_accessed=(itemsize * (B_pad * (IN + A) + H * (IN + H + A) + H * OUT)
                        + 4 * (2 * H + OUT) + 4 * B_pad * OUT),
    )

    out = pl.pallas_call(
        _make_kernel(scalar_out),
        out_shape=jax.ShapeDtypeStruct((B_pad, OUT), jnp.float32),
        grid=(grid_n,),
        in_specs=in_specs,
        out_specs=out_specs,
        compiler_params=pltpu.CompilerParams(
            dimension_semantics=("parallel",)),
        cost_estimate=cost,
    )(s, a, w1t, b1r, w2xt, w2at, b2r, w3_arg, b3r)

    return out[:B]


# ------------------------------ reference & init --------------------------------

def init_params(key, input_dim, action_dim, hidden, out_dim):
    """PyTorch nn.Linear-style init; weights in (out_features, in_features) layout."""
    ks = jax.random.split(key, 6)

    def linear(kw, kb, fan_in, fan_out):
        bound = 1.0 / math.sqrt(fan_in)
        w = jax.random.uniform(kw, (fan_out, fan_in), jnp.float32, -bound, bound)
        b = jax.random.uniform(kb, (fan_out,), jnp.float32, -bound, bound)
        return w, b

    w1, b1 = linear(ks[0], ks[1], input_dim, hidden)
    w2, b2 = linear(ks[2], ks[3], hidden + action_dim, hidden)
    w3, b3 = linear(ks[4], ks[5], hidden, out_dim)
    return dict(w1=w1, b1=b1, w2=w2, b2=b2, w3=w3, b3=b3)


def reference_forward(states, actions, p):
    x = jnp.maximum(states @ p["w1"].T + p["b1"], 0.0)
    x = jnp.concatenate([x, actions], axis=1)
    x = jnp.maximum(x @ p["w2"].T + p["b2"], 0.0)
    return x @ p["w3"].T + p["b3"]


# ------------------------------------ main ---------------------------------------

if __name__ == "__main__":
    # module-consistent small shapes:
    #   input (state dim) = 32, num_hidden_layers (hidden width) = 32,
    #   action_dim = 16, output_q_value = 1, batch = 8
    key = jax.random.PRNGKey(0)

    def run_case(B, INPUT, ACTION, HIDDEN, OUT, tile_b=None, seed=0):
        k_s, k_a, k_p = jax.random.split(jax.random.fold_in(key, seed), 3)
        states = jax.random.normal(k_s, (B, INPUT), jnp.float32)
        actions = jax.random.normal(k_a, (B, ACTION), jnp.float32)
        params = init_params(k_p, INPUT, ACTION, HIDDEN, OUT)

        out = critic_forward(states, actions, params, tile_b=tile_b)
        out = jax.block_until_ready(out)

        ref = reference_forward(states, actions, params)
        assert out.shape == (B, OUT), (out.shape, (B, OUT))
        assert jnp.allclose(out, ref, atol=2e-5, rtol=1e-5), \
            f"mismatch vs reference (max abs err {jnp.max(jnp.abs(out - ref))})"

    # 1) canonical critic shapes (out_dim == 1 -> VPU/XLU final layer)
    run_case(B=8, INPUT=32, ACTION=16, HIDDEN=32, OUT=1, seed=0)
    # 2) multi-tile grid with batch padding (B not a multiple of the tile)
    run_case(B=300, INPUT=32, ACTION=16, HIDDEN=32, OUT=1, tile_b=128, seed=1)
    # 3) out_dim > 1 fallback path (final layer on the MXU)
    run_case(B=8, INPUT=32, ACTION=16, HIDDEN=32, OUT=3, seed=2)

    print("KERNEL_OK")
</pallas_src>

<mosaic_0001>
module attributes {stable_mosaic.version = 11 : i64} {
  func.func @kernel(%arg0: i32, %arg1: memref<128x32xf32, #tpu.memory_space<vmem>>, %arg2: memref<128x16xf32, #tpu.memory_space<vmem>>, %arg3: memref<32x32xf32, #tpu.memory_space<vmem>>, %arg4: memref<1x32xf32, #tpu.memory_space<vmem>>, %arg5: memref<32x32xf32, #tpu.memory_space<vmem>>, %arg6: memref<16x32xf32, #tpu.memory_space<vmem>>, %arg7: memref<1x32xf32, #tpu.memory_space<vmem>>, %arg8: memref<1x32xf32, #tpu.memory_space<vmem>>, %arg9: memref<1x1xf32, #tpu.memory_space<vmem>>, %arg10: memref<128x1xf32, #tpu.memory_space<vmem>>) attributes {dimension_semantics = [#tpu.dimension_semantics<parallel>], iteration_bounds = array<i64: 1>, scalar_prefetch = 0 : i64, scratch_operands = 0 : i64, tpu.core_type = #tpu.core_type<tc>, window_params = [{transform_indices = @transform_0, window_bounds = array<i64: 128, 32>}, {transform_indices = @transform_1, window_bounds = array<i64: 128, 16>}, {pipeline_mode = #tpu.pipeline_mode<synchronous>, transform_indices = @transform_2, window_bounds = array<i64: 32, 32>}, {pipeline_mode = #tpu.pipeline_mode<synchronous>, transform_indices = @transform_3, window_bounds = array<i64: 1, 32>}, {pipeline_mode = #tpu.pipeline_mode<synchronous>, transform_indices = @transform_4, window_bounds = array<i64: 32, 32>}, {pipeline_mode = #tpu.pipeline_mode<synchronous>, transform_indices = @transform_5, window_bounds = array<i64: 16, 32>}, {pipeline_mode = #tpu.pipeline_mode<synchronous>, transform_indices = @transform_6, window_bounds = array<i64: 1, 32>}, {pipeline_mode = #tpu.pipeline_mode<synchronous>, transform_indices = @transform_7, window_bounds = array<i64: 1, 32>}, {pipeline_mode = #tpu.pipeline_mode<synchronous>, transform_indices = @transform_8, window_bounds = array<i64: 1, 1>}, {transform_indices = @transform_9, window_bounds = array<i64: 128, 1>}]} {
    %c0 = arith.constant 0 : index
    %c0_0 = arith.constant 0 : index
    %0 = vector.load %arg1[%c0, %c0_0] : memref<128x32xf32, #tpu.memory_space<vmem>>, vector<128x32xf32>
    %c0_1 = arith.constant 0 : index
    %c0_2 = arith.constant 0 : index
    %1 = vector.load %arg3[%c0_1, %c0_2] : memref<32x32xf32, #tpu.memory_space<vmem>>, vector<32x32xf32>
    %cst = arith.constant dense<0.000000e+00> : vector<128x32xf32>
    %2 = tpu.matmul %0, %1, %cst {dimension_numbers = #tpu.dot_dimension_numbers<[1], [0], [0], [1], [0, 0, 1, 1], [], []>} : vector<128x32xf32>, vector<32x32xf32>, vector<128x32xf32> -> vector<128x32xf32>
    %c0_3 = arith.constant 0 : index
    %c0_4 = arith.constant 0 : index
    %3 = vector.load %arg4[%c0_3, %c0_4] : memref<1x32xf32, #tpu.memory_space<vmem>>, vector<1x32xf32>
    %4 = vector.broadcast %3 : vector<1x32xf32> to vector<128x32xf32>
    %5 = arith.addf %2, %4 : vector<128x32xf32>
    %cst_5 = arith.constant 0.000000e+00 : f32
    %6 = vector.broadcast %cst_5 : f32 to vector<128x32xf32>
    %7 = arith.maximumf %5, %6 : vector<128x32xf32>
    %c0_6 = arith.constant 0 : index
    %c0_7 = arith.constant 0 : index
    %8 = vector.load %arg5[%c0_6, %c0_7] : memref<32x32xf32, #tpu.memory_space<vmem>>, vector<32x32xf32>
    %cst_8 = arith.constant dense<0.000000e+00> : vector<128x32xf32>
    %9 = tpu.matmul %7, %8, %cst_8 {dimension_numbers = #tpu.dot_dimension_numbers<[1], [0], [0], [1], [0, 0, 1, 1], [], []>} : vector<128x32xf32>, vector<32x32xf32>, vector<128x32xf32> -> vector<128x32xf32>
    %c0_9 = arith.constant 0 : index
    %c0_10 = arith.constant 0 : index
    %10 = vector.load %arg2[%c0_9, %c0_10] : memref<128x16xf32, #tpu.memory_space<vmem>>, vector<128x16xf32>
    %c0_11 = arith.constant 0 : index
    %c0_12 = arith.constant 0 : index
    %11 = vector.load %arg6[%c0_11, %c0_12] : memref<16x32xf32, #tpu.memory_space<vmem>>, vector<16x32xf32>
    %cst_13 = arith.constant dense<0.000000e+00> : vector<128x32xf32>
    %12 = tpu.matmul %10, %11, %cst_13 {dimension_numbers = #tpu.dot_dimension_numbers<[1], [0], [0], [1], [0, 0, 1, 1], [], []>} : vector<128x16xf32>, vector<16x32xf32>, vector<128x32xf32> -> vector<128x32xf32>
    %13 = arith.addf %9, %12 : vector<128x32xf32>
    %c0_14 = arith.constant 0 : index
    %c0_15 = arith.constant 0 : index
    %14 = vector.load %arg7[%c0_14, %c0_15] : memref<1x32xf32, #tpu.memory_space<vmem>>, vector<1x32xf32>
    %15 = vector.broadcast %14 : vector<1x32xf32> to vector<128x32xf32>
    %16 = arith.addf %13, %15 : vector<128x32xf32>
    %cst_16 = arith.constant 0.000000e+00 : f32
    %17 = vector.broadcast %cst_16 : f32 to vector<128x32xf32>
    %18 = arith.maximumf %16, %17 : vector<128x32xf32>
    %c0_17 = arith.constant 0 : index
    %c0_18 = arith.constant 0 : index
    %19 = vector.load %arg8[%c0_17, %c0_18] : memref<1x32xf32, #tpu.memory_space<vmem>>, vector<1x32xf32>
    %20 = vector.broadcast %19 : vector<1x32xf32> to vector<128x32xf32>
    %21 = arith.mulf %18, %20 : vector<128x32xf32>
    %cst_19 = arith.constant dense<0.000000e+00> : vector<128xf32>
    %22 = vector.multi_reduction <add>, %21, %cst_19 [1] : vector<128x32xf32> to vector<128xf32>
    %23 = vector.shape_cast %22 : vector<128xf32> to vector<128x1xf32>
    %c0_20 = arith.constant 0 : index
    %c0_21 = arith.constant 0 : index
    %24 = vector.load %arg9[%c0_20, %c0_21] : memref<1x1xf32, #tpu.memory_space<vmem>>, vector<1x1xf32>
    %25 = vector.broadcast %24 : vector<1x1xf32> to vector<128x1xf32>
    %26 = arith.addf %23, %25 : vector<128x1xf32>
    %c0_22 = arith.constant 0 : index
    %c0_23 = arith.constant 0 : index
    %27 = vector.load %arg10[%c0_22, %c0_23] : memref<128x1xf32, #tpu.memory_space<vmem>>, vector<128x1xf32>
    tpu.vector_store %arg10[%c0_22, %c0_23], %26 {strides = array<i32>} : memref<128x1xf32, #tpu.memory_space<vmem>>, vector<128x1xf32>,
    return
  }
  func.func @transform_0(%arg0: i32) -> (i32, i32) {
    %c0_i32 = arith.constant 0 : i32
    %c0_i32_0 = arith.constant 0 : i32
    return %arg0, %c0_i32 : i32, i32
  }
  func.func @transform_1(%arg0: i32) -> (i32, i32) {
    %c0_i32 = arith.constant 0 : i32
    %c0_i32_0 = arith.constant 0 : i32
    return %arg0, %c0_i32 : i32, i32
  }
  func.func @transform_2(%arg0: i32) -> (i32, i32) {
    %c0_i32 = arith.constant 0 : i32
    %c0_i32_0 = arith.constant 0 : i32
    %c0_i32_1 = arith.constant 0 : i32
    return %c0_i32, %c0_i32_0 : i32, i32
  }
  func.func @transform_3(%arg0: i32) -> (i32, i32) {
    %c0_i32 = arith.constant 0 : i32
    %c0_i32_0 = arith.constant 0 : i32
    %c0_i32_1 = arith.constant 0 : i32
    return %c0_i32, %c0_i32_0 : i32, i32
  }
  func.func @transform_4(%arg0: i32) -> (i32, i32) {
    %c0_i32 = arith.constant 0 : i32
    %c0_i32_0 = arith.constant 0 : i32
    %c0_i32_1 = arith.constant 0 : i32
    return %c0_i32, %c0_i32_0 : i32, i32
  }
  func.func @transform_5(%arg0: i32) -> (i32, i32) {
    %c0_i32 = arith.constant 0 : i32
    %c0_i32_0 = arith.constant 0 : i32
    %c0_i32_1 = arith.constant 0 : i32
    return %c0_i32, %c0_i32_0 : i32, i32
  }
  func.func @transform_6(%arg0: i32) -> (i32, i32) {
    %c0_i32 = arith.constant 0 : i32
    %c0_i32_0 = arith.constant 0 : i32
    %c0_i32_1 = arith.constant 0 : i32
    return %c0_i32, %c0_i32_0 : i32, i32
  }
  func.func @transform_7(%arg0: i32) -> (i32, i32) {
    %c0_i32 = arith.constant 0 : i32
    %c0_i32_0 = arith.constant 0 : i32
    %c0_i32_1 = arith.constant 0 : i32
    return %c0_i32, %c0_i32_0 : i32, i32
  }
  func.func @transform_8(%arg0: i32) -> (i32, i32) {
    %c0_i32 = arith.constant 0 : i32
    %c0_i32_0 = arith.constant 0 : i32
    %c0_i32_1 = arith.constant 0 : i32
    return %c0_i32, %c0_i32_0 : i32, i32
  }
  func.func @transform_9(%arg0: i32) -> (i32, i32) {
    %c0_i32 = arith.constant 0 : i32
    %c0_i32_0 = arith.constant 0 : i32
    return %arg0, %c0_i32 : i32, i32
  }
}

</mosaic_0001>

<llo_original>
// kernel: tpu_custom_call.1
$region0: #{tpu_custom_call.1}
  #allocation0 [shape = 'u32[]', space=smem, size = 0x4, offset = 0x4, fixed_abs, tag = 'smem constant byte address 0x4 - core index']
  #allocation1 [shape = 'u32[144,128]{1,0:T(1,128)}', space=vmem, size = 0x12000, scoped, tag = 'internal scratch']
  #allocation2 [shape = 'f32[1,1]{1,0:T(1,128)S(1)}', space=vmem, size = 0x200, scoped, tag = 'scoped memory for tpu_custom_call.1']
  %s0 = inlined_call_operand.vmem [shape: f32[128,32], index: 0, kind: input, shape index: {}]
  %s1 = inlined_call_operand.vmem [shape: f32[128,16], index: 1, kind: input, shape index: {}]
  %s2 = inlined_call_operand.vmem [shape: f32[32,32], index: 2, kind: input, shape index: {}]
  %s3 = inlined_call_operand.vmem [shape: f32[1,32], index: 3, kind: input, shape index: {}]
  %s4 = inlined_call_operand.vmem [shape: f32[32,32], index: 4, kind: input, shape index: {}]
  %s5 = inlined_call_operand.vmem [shape: f32[16,32], index: 5, kind: input, shape index: {}]
  %s6 = inlined_call_operand.vmem [shape: f32[1,32], index: 6, kind: input, shape index: {}]
  %s7 = inlined_call_operand.vmem [shape: f32[1,32], index: 7, kind: input, shape index: {}]
  %s8 = inlined_call_operand.<no memory space> [shape: f32[1,1], index: 8, kind: input, shape index: {}]
  %s9 = inlined_call_operand.vmem [shape: f32[128,1], index: 9, kind: output, shape index: {}]
  %s10 = sld [smem:[#allocation0]]
  $region46: #{tpu_custom_call.1} parent=0
    _
  %s12 = ssub.s32 1, %s10
  %s13 = scalar_select 0, %s12, %s10
  %v14 = vstv %s8
  %15 = vst [vmem:[#allocation2] sm:$0x1] %v14
  // Predicated region
  $region2: #{tpu_custom_call.1} parent=0 // pred_check
    _
  $region3: #{tpu_custom_call.1} parent=0 // pred_check_branch
    %17 = sbr.rel (0) target = $region5
  $region4: #{tpu_custom_call.1} parent=0 // pred_region
    _
  $region5: #{tpu_custom_call.1} parent=0 // pred_fallthru
    _
  // Predicated region
  $region6: #{tpu_custom_call.1} parent=0 // pred_check
    _
  $region7: #{tpu_custom_call.1} parent=0 // pred_check_branch
    %19 = sbr.rel (0) target = $region9
  $region8: #{tpu_custom_call.1} parent=0 // pred_region
    _
  $region9: #{tpu_custom_call.1} parent=0 // pred_fallthru
    _
  // Predicated region
  $region10: #{tpu_custom_call.1} parent=0 // pred_check
    _
  $region11: #{tpu_custom_call.1} parent=0 // pred_check_branch
    %21 = sbr.rel (0) target = $region13
  $region12: #{tpu_custom_call.1} parent=0 // pred_region
    _
  $region13: #{tpu_custom_call.1} parent=0 // pred_fallthru
    _
  // Predicated region
  $region14: #{tpu_custom_call.1} parent=0 // pred_check
    _
  $region15: #{tpu_custom_call.1} parent=0 // pred_check_branch
    %23 = sbr.rel (0) target = $region17
  $region16: #{tpu_custom_call.1} parent=0 // pred_region
    _
  $region17: #{tpu_custom_call.1} parent=0 // pred_fallthru
    _
  // Predicated region
  $region18: #{tpu_custom_call.1} parent=0 // pred_check
    _
  $region19: #{tpu_custom_call.1} parent=0 // pred_check_branch
    %25 = sbr.rel (0) target = $region21
  $region20: #{tpu_custom_call.1} parent=0 // pred_region
    _
  $region21: #{tpu_custom_call.1} parent=0 // pred_fallthru
    _
  // Predicated region
  $region22: #{tpu_custom_call.1} parent=0 // pred_check
    _
  $region23: #{tpu_custom_call.1} parent=0 // pred_check_branch
    %27 = sbr.rel (0) target = $region25
  $region24: #{tpu_custom_call.1} parent=0 // pred_region
    _
  $region25: #{tpu_custom_call.1} parent=0 // pred_fallthru
    _
  // Predicated region
  $region26: #{tpu_custom_call.1} parent=0 // pred_check
    _
  $region27: #{tpu_custom_call.1} parent=0 // pred_check_branch
    %29 = sbr.rel (0) target = $region29
  $region28: #{tpu_custom_call.1} parent=0 // pred_region
    _
  $region29: #{tpu_custom_call.1} parent=0 // pred_fallthru
    _
  // Predicated region
  $region30: #{tpu_custom_call.1} parent=0 // pred_check
    _
  $region31: #{tpu_custom_call.1} parent=0 // pred_check_branch
    %31 = sbr.rel (0) target = $region33
  $region32: #{tpu_custom_call.1} parent=0 // pred_region
    _
  $region33: #{tpu_custom_call.1} parent=0 // pred_fallthru
    _
  // Predicated region
  $region34: #{tpu_custom_call.1} parent=0 // pred_check
    _
  $region35: #{tpu_custom_call.1} parent=0 // pred_check_branch
    %33 = sbr.rel (0) target = $region37
  $region36: #{tpu_custom_call.1} parent=0 // pred_region
    _
  $region37: #{tpu_custom_call.1} parent=0 // pred_fallthru
    _
  %v34 = vld [vmem:[%s0] sm:$0xff]
  %v35 = vld [vmem:[%s0 + $0x8] sm:$0xff]
  %v36 = vld [vmem:[%s0 + $0x10] sm:$0xff]
  %v37 = vld [vmem:[%s0 + $0x18] sm:$0xff]
  %v38 = vld [vmem:[%s0 + $0x20] sm:$0xff]
  %v39 = vld [vmem:[%s0 + $0x28] sm:$0xff]
  %v40 = vld [vmem:[%s0 + $0x30] sm:$0xff]
  %v41 = vld [vmem:[%s0 + $0x38] sm:$0xff]
  %v42 = vld [vmem:[%s0 + $0x40] sm:$0xff]
  %v43 = vld [vmem:[%s0 + $0x48] sm:$0xff]
  %v44 = vld [vmem:[%s0 + $0x50] sm:$0xff]
  %v45 = vld [vmem:[%s0 + $0x58] sm:$0xff]
  %v46 = vld [vmem:[%s0 + $0x60] sm:$0xff]
  %v47 = vld [vmem:[%s0 + $0x68] sm:$0xff]
  %v48 = vld [vmem:[%s0 + $0x70] sm:$0xff]
  %v49 = vld [vmem:[%s0 + $0x78] sm:$0xff]
  %v50 = vld [vmem:[%s2] sm:$0xff]
  %v51 = vld [vmem:[%s2 + $0x8] sm:$0xff]
  %v52 = vld [vmem:[%s2 + $0x10] sm:$0xff]
  %v53 = vld [vmem:[%s2 + $0x18] sm:$0xff]
  %v54 = vld [vmem:[%s3] sm:$0x1]
  %v56 = vlaneseq
  %v57 = vshrl.u32 %v56, 7
  %v58 = vsub.s32 0, %v57
  %v59 = vrot.slane %v54, %v58
  %vm61 = vcmask 261120
  %v63 = vsel %vm61, %v34, 0
  %v66 = vsel %vm61, %v35, 0
  %v69 = vsel %vm61, %v36, 0
  %v72 = vsel %vm61, %v37, 0
  %v75 = vsel %vm61, %v38, 0
  %v78 = vsel %vm61, %v39, 0
  %v81 = vsel %vm61, %v40, 0
  %v84 = vsel %vm61, %v41, 0
  %v87 = vsel %vm61, %v42, 0
  %v90 = vsel %vm61, %v43, 0
  %v93 = vsel %vm61, %v44, 0
  %v96 = vsel %vm61, %v45, 0
  %v99 = vsel %vm61, %v46, 0
  %v102 = vsel %vm61, %v47, 0
  %v105 = vsel %vm61, %v48, 0
  %v108 = vsel %vm61, %v49, 0
  %110 = vmatprep.subr.mxu0 0.0
  %111 = vmatpush1.msra.mxu0 %v50
  %112 = vmatprep.subr.mxu0 0.0
  %113 = vmatpush1.msra.mxu0 %v51
  %114 = vmatprep.subr.mxu0 0.0
  %115 = vmatpush1.msra.mxu0 %v52
  %116 = vmatprep.subr.mxu0 0.0
  %117 = vmatpush1.msra.mxu0 %v53
  %118 = vmatprep.subr.mxu0 0.0
  %119 = vmatpush1.msra.mxu0 0.0
  %120 = vmatprep.subr.mxu0 0.0
  %121 = vmatpush1.msra.mxu0 0.0
  %122 = vmatprep.subr.mxu0 0.0
  %123 = vmatpush1.msra.mxu0 0.0
  %124 = vmatprep.subr.mxu0 0.0
  %125 = vmatpush1.msra.mxu0 0.0
  %126 = vmatprep.subr.mxu0 0.0
  %127 = vmatpush1.msra.mxu0 0.0
  %128 = vmatprep.subr.mxu0 0.0
  %129 = vmatpush1.msra.mxu0 0.0
  %130 = vmatprep.subr.mxu0 0.0
  %131 = vmatpush1.msra.mxu0 0.0
  %132 = vmatprep.subr.mxu0 0.0
  %133 = vmatpush1.msra.mxu0 0.0
  %134 = vmatprep.subr.mxu0 0.0
  %135 = vmatpush1.msra.mxu0 0.0
  %136 = vmatprep.subr.mxu0 0.0
  %137 = vmatpush1.msra.mxu0 0.0
  %138 = vmatprep.subr.mxu0 0.0
  %139 = vmatpush1.msra.mxu0 0.0
  %140 = vmatprep.subr.mxu0 0.0
  %141 = vmatpush1.msra.mxu0 0.0
  %142 = vmatprep.subr.mxu0 0.0
  %143 = vmatpush1.msra.mxu0 0.0
  %144 = vmatprep.subr.mxu0 0.0
  %145 = vmatpush1.msra.mxu0 0.0
  %146 = vmatprep.subr.mxu0 0.0
  %147 = vmatpush1.msra.mxu0 0.0
  %148 = vmatprep.subr.mxu0 0.0
  %149 = vmatpush1.msra.mxu0 0.0
  %150 = vmatprep.subr.mxu0 0.0
  %151 = vmatpush1.msra.mxu0 0.0
  %152 = vmatprep.subr.mxu0 0.0
  %153 = vmatpush1.msra.mxu0 0.0
  %154 = vmatprep.subr.mxu0 0.0
  %155 = vmatpush1.msra.mxu0 0.0
  %156 = vmatprep.subr.mxu0 0.0
  %157 = vmatpush1.msra.mxu0 0.0
  %158 = vmatprep.subr.mxu0 0.0
  %159 = vmatpush1.msra.mxu0 0.0
  %160 = vmatprep.subr.mxu0 0.0
  %161 = vmatpush1.msra.mxu0 0.0
  %162 = vmatprep.subr.mxu0 0.0
  %163 = vmatpush1.msra.mxu0 0.0
  %164 = vmatprep.subr.mxu0 0.0
  %165 = vmatpush1.msra.mxu0 0.0
  %166 = vmatprep.subr.mxu0 0.0
  %167 = vmatpush1.msra.mxu0 0.0
  %168 = vmatprep.subr.mxu0 0.0
  %169 = vmatpush1.msra.mxu0 0.0
  %170 = vmatprep.subr.mxu0 0.0
  %171 = vmatpush1.msra.mxu0 0.0
  %172 = vmatprep.subr.mxu0 0.0
  %173 = vmatpush1.msra.mxu0 0.0
  %174 = vmatprep.mubr.f32.mxu0 0.0
  %175 = vmatmul.mubr.f32.gmra.mrb[0].mxu0 %v63
  %v176 = vpop.f32.mrb[0].mxu0
  %v177 = vadd.f32 %v59, %v176
  %v178 = vpop.f32.mrb[0].mxu0
  %179 = vmatprep.mubr.f32.mxu0 0.0
  %180 = vmatmul.mubr.f32.gmra.mrb[0].mxu0 %v66
  %v181 = vpop.f32.mrb[0].mxu0
  %v182 = vadd.f32 %v59, %v181
  %v183 = vpop.f32.mrb[0].mxu0
  %184 = vmatprep.mubr.f32.mxu0 0.0
  %185 = vmatmul.mubr.f32.gmra.mrb[0].mxu0 %v69
  %v186 = vpop.f32.mrb[0].mxu0
  %v187 = vadd.f32 %v59, %v186
  %v188 = vpop.f32.mrb[0].mxu0
  %189 = vmatprep.mubr.f32.mxu0 0.0
  %190 = vmatmul.mubr.f32.gmra.mrb[0].mxu0 %v72
  %v191 = vpop.f32.mrb[0].mxu0
  %v192 = vadd.f32 %v59, %v191
  %v193 = vpop.f32.mrb[0].mxu0
  %194 = vmatprep.mubr.f32.mxu0 0.0
  %195 = vmatmul.mubr.f32.gmra.mrb[0].mxu0 %v75
  %v196 = vpop.f32.mrb[0].mxu0
  %v197 = vadd.f32 %v59, %v196
  %v198 = vpop.f32.mrb[0].mxu0
  %199 = vmatprep.mubr.f32.mxu0 0.0
  %200 = vmatmul.mubr.f32.gmra.mrb[0].mxu0 %v78
  %v201 = vpop.f32.mrb[0].mxu0
  %v202 = vadd.f32 %v59, %v201
  %v203 = vpop.f32.mrb[0].mxu0
  %204 = vmatprep.mubr.f32.mxu0 0.0
  %205 = vmatmul.mubr.f32.gmra.mrb[0].mxu0 %v81
  %v206 = vpop.f32.mrb[0].mxu0
  %v207 = vadd.f32 %v59, %v206
  %v208 = vpop.f32.mrb[0].mxu0
  %209 = vmatprep.mubr.f32.mxu0 0.0
  %210 = vmatmul.mubr.f32.gmra.mrb[0].mxu0 %v84
  %v211 = vpop.f32.mrb[0].mxu0
  %v212 = vadd.f32 %v59, %v211
  %v213 = vpop.f32.mrb[0].mxu0
  %214 = vmatprep.mubr.f32.mxu0 0.0
  %215 = vmatmul.mubr.f32.gmra.mrb[0].mxu0 %v87
  %v216 = vpop.f32.mrb[0].mxu0
  %v217 = vadd.f32 %v59, %v216
  %v218 = vpop.f32.mrb[0].mxu0
  %219 = vmatprep.mubr.f32.mxu0 0.0
  %220 = vmatmul.mubr.f32.gmra.mrb[0].mxu0 %v90
  %v221 = vpop.f32.mrb[0].mxu0
  %v222 = vadd.f32 %v59, %v221
  %v223 = vpop.f32.mrb[0].mxu0
  %224 = vmatprep.mubr.f32.mxu0 0.0
  %225 = vmatmul.mubr.f32.gmra.mrb[0].mxu0 %v93
  %v226 = vpop.f32.mrb[0].mxu0
  %v227 = vadd.f32 %v59, %v226
  %v228 = vpop.f32.mrb[0].mxu0
  %229 = vmatprep.mubr.f32.mxu0 0.0
  %230 = vmatmul.mubr.f32.gmra.mrb[0].mxu0 %v96
  %v231 = vpop.f32.mrb[0].mxu0
  %v232 = vadd.f32 %v59, %v231
  %v233 = vpop.f32.mrb[0].mxu0
  %234 = vmatprep.mubr.f32.mxu0 0.0
  %235 = vmatmul.mubr.f32.gmra.mrb[0].mxu0 %v99
  %v236 = vpop.f32.mrb[0].mxu0
  %v237 = vadd.f32 %v59, %v236
  %v238 = vpop.f32.mrb[0].mxu0
  %239 = vmatprep.mubr.f32.mxu0 0.0
  %240 = vmatmul.mubr.f32.gmra.mrb[0].mxu0 %v102
  %v241 = vpop.f32.mrb[0].mxu0
  %v242 = vadd.f32 %v59, %v241
  %v243 = vpop.f32.mrb[0].mxu0
  %244 = vmatprep.mubr.f32.mxu0 0.0
  %245 = vmatmul.mubr.f32.gmra.mrb[0].mxu0 %v105
  %v246 = vpop.f32.mrb[0].mxu0
  %v247 = vadd.f32 %v59, %v246
  %v248 = vpop.f32.mrb[0].mxu0
  %249 = vmatprep.mubr.f32.mxu0 0.0
  %250 = vmatmul.mubr.f32.gmra.mrb[0].mxu0 %v108
  %v251 = vpop.f32.mrb[0].mxu0
  %v252 = vadd.f32 %v59, %v251
  %v253 = vpop.f32.mrb[0].mxu0
  %254 = vdwg.mxu0
  %v255 = vmax.f32 %v177, 0.0
  %v256 = vmax.f32 %v182, 0.0
  %v257 = vmax.f32 %v187, 0.0
  %v258 = vmax.f32 %v192, 0.0
  %v259 = vmax.f32 %v197, 0.0
  %v260 = vmax.f32 %v202, 0.0
  %v261 = vmax.f32 %v207, 0.0
  %v262 = vmax.f32 %v212, 0.0
  %v263 = vmax.f32 %v217, 0.0
  %v264 = vmax.f32 %v222, 0.0
  %v265 = vmax.f32 %v227, 0.0
  %v266 = vmax.f32 %v232, 0.0
  %v267 = vmax.f32 %v237, 0.0
  %v268 = vmax.f32 %v242, 0.0
  %v269 = vmax.f32 %v247, 0.0
  %v270 = vmax.f32 %v252, 0.0
  %v271 = vld [vmem:[%s4] sm:$0xff]
  %v272 = vld [vmem:[%s4 + $0x8] sm:$0xff]
  %v273 = vld [vmem:[%s4 + $0x10] sm:$0xff]
  %v274 = vld [vmem:[%s4 + $0x18] sm:$0xff]
  %v275 = vld [vmem:[%s1] sm:$0xff]
  %v276 = vld [vmem:[%s1 + $0x8] sm:$0xff]
  %v277 = vld [vmem:[%s1 + $0x10] sm:$0xff]
  %v278 = vld [vmem:[%s1 + $0x18] sm:$0xff]
  %v279 = vld [vmem:[%s1 + $0x20] sm:$0xff]
  %v280 = vld [vmem:[%s1 + $0x28] sm:$0xff]
  %v281 = vld [vmem:[%s1 + $0x30] sm:$0xff]
  %v282 = vld [vmem:[%s1 + $0x38] sm:$0xff]
  %v283 = vld [vmem:[%s1 + $0x40] sm:$0xff]
  %v284 = vld [vmem:[%s1 + $0x48] sm:$0xff]
  %v285 = vld [vmem:[%s1 + $0x50] sm:$0xff]
  %v286 = vld [vmem:[%s1 + $0x58] sm:$0xff]
  %v287 = vld [vmem:[%s1 + $0x60] sm:$0xff]
  %v288 = vld [vmem:[%s1 + $0x68] sm:$0xff]
  %v289 = vld [vmem:[%s1 + $0x70] sm:$0xff]
  %v290 = vld [vmem:[%s1 + $0x78] sm:$0xff]
  %v291 = vld [vmem:[%s5] sm:$0xff]
  %v292 = vld [vmem:[%s5 + $0x8] sm:$0xff]
  %vm293 = vcmask 130048
  %v295 = vsel %vm293, %v275, 0
  %v298 = vsel %vm293, %v276, 0
  %v301 = vsel %vm293, %v277, 0
  %v304 = vsel %vm293, %v278, 0
  %v307 = vsel %vm293, %v279, 0
  %v310 = vsel %vm293, %v280, 0
  %v313 = vsel %vm293, %v281, 0
  %v316 = vsel %vm293, %v282, 0
  %v319 = vsel %vm293, %v283, 0
  %v322 = vsel %vm293, %v284, 0
  %v325 = vsel %vm293, %v285, 0
  %v328 = vsel %vm293, %v286, 0
  %v331 = vsel %vm293, %v287, 0
  %v334 = vsel %vm293, %v288, 0
  %v337 = vsel %vm293, %v289, 0
  %v340 = vsel %vm293, %v290, 0
  %342 = vmatprep.subr.mxu0 0.0
  %343 = vmatpush1.msra.mxu0 %v291
  %344 = vmatprep.subr.mxu0 0.0
  %345 = vmatpush1.msra.mxu0 %v292
  %346 = vmatprep.subr.mxu0 0.0
  %347 = vmatpush1.msra.mxu0 0.0
  %348 = vmatprep.subr.mxu0 0.0
  %349 = vmatpush1.msra.mxu0 0.0
  %350 = vmatprep.subr.mxu0 0.0
  %351 = vmatpush1.msra.mxu0 0.0
  %352 = vmatprep.subr.mxu0 0.0
  %353 = vmatpush1.msra.mxu0 0.0
  %354 = vmatprep.subr.mxu0 0.0
  %355 = vmatpush1.msra.mxu0 0.0
  %356 = vmatprep.subr.mxu0 0.0
  %357 = vmatpush1.msra.mxu0 0.0
  %358 = vmatprep.subr.mxu0 0.0
  %359 = vmatpush1.msra.mxu0 0.0
  %360 = vmatprep.subr.mxu0 0.0
  %361 = vmatpush1.msra.mxu0 0.0
  %362 = vmatprep.subr.mxu0 0.0
  %363 = vmatpush1.msra.mxu0 0.0
  %364 = vmatprep.subr.mxu0 0.0
  %365 = vmatpush1.msra.mxu0 0.0
  %366 = vmatprep.subr.mxu0 0.0
  %367 = vmatpush1.msra.mxu0 0.0
  %368 = vmatprep.subr.mxu0 0.0
  %369 = vmatpush1.msra.mxu0 0.0
  %370 = vmatprep.subr.mxu0 0.0
  %371 = vmatpush1.msra.mxu0 0.0
  %372 = vmatprep.subr.mxu0 0.0
  %373 = vmatpush1.msra.mxu0 0.0
  %374 = vmatprep.subr.mxu0 0.0
  %375 = vmatpush1.msra.mxu0 0.0
  %376 = vmatprep.subr.mxu0 0.0
  %377 = vmatpush1.msra.mxu0 0.0
  %378 = vmatprep.subr.mxu0 0.0
  %379 = vmatpush1.msra.mxu0 0.0
  %380 = vmatprep.subr.mxu0 0.0
  %381 = vmatpush1.msra.mxu0 0.0
  %382 = vmatprep.subr.mxu0 0.0
  %383 = vmatpush1.msra.mxu0 0.0
  %384 = vmatprep.subr.mxu0 0.0
  %385 = vmatpush1.msra.mxu0 0.0
  %386 = vmatprep.subr.mxu0 0.0
  %387 = vmatpush1.msra.mxu0 0.0
  %388 = vmatprep.subr.mxu0 0.0
  %389 = vmatpush1.msra.mxu0 0.0
  %390 = vmatprep.subr.mxu0 0.0
  %391 = vmatpush1.msra.mxu0 0.0
  %392 = vmatprep.subr.mxu0 0.0
  %393 = vmatpush1.msra.mxu0 0.0
  %394 = vmatprep.subr.mxu0 0.0
  %395 = vmatpush1.msra.mxu0 0.0
  %396 = vmatprep.subr.mxu0 0.0
  %397 = vmatpush1.msra.mxu0 0.0
  %398 = vmatprep.subr.mxu0 0.0
  %399 = vmatpush1.msra.mxu0 0.0
  %400 = vmatprep.subr.mxu0 0.0
  %401 = vmatpush1.msra.mxu0 0.0
  %402 = vmatprep.subr.mxu0 0.0
  %403 = vmatpush1.msra.mxu0 0.0
  %404 = vmatprep.subr.mxu0 0.0
  %405 = vmatpush1.msra.mxu0 0.0
  %406 = vmatprep.mubr.f32.mxu0 0.0
  %407 = vmatmul.mubr.f32.gmra.mrb[0].mxu0 %v295
  %v408 = vpop.f32.mrb[0].mxu0
  %v409 = vadd.f32 0.0, %v408
  %v410 = vpop.f32.mrb[0].mxu0
  %411 = vmatprep.mubr.f32.mxu0 0.0
  %412 = vmatmul.mubr.f32.gmra.mrb[0].mxu0 %v298
  %v413 = vpop.f32.mrb[0].mxu0
  %v414 = vadd.f32 0.0, %v413
  %v415 = vpop.f32.mrb[0].mxu0
  %416 = vmatprep.mubr.f32.mxu0 0.0
  %417 = vmatmul.mubr.f32.gmra.mrb[0].mxu0 %v301
  %v418 = vpop.f32.mrb[0].mxu0
  %v419 = vadd.f32 0.0, %v418
  %v420 = vpop.f32.mrb[0].mxu0
  %421 = vmatprep.mubr.f32.mxu0 0.0
  %422 = vmatmul.mubr.f32.gmra.mrb[0].mxu0 %v304
  %v423 = vpop.f32.mrb[0].mxu0
  %v424 = vadd.f32 0.0, %v423
  %v425 = vpop.f32.mrb[0].mxu0
  %426 = vmatprep.mubr.f32.mxu0 0.0
  %427 = vmatmul.mubr.f32.gmra.mrb[0].mxu0 %v307
  %v428 = vpop.f32.mrb[0].mxu0
  %v429 = vadd.f32 0.0, %v428
  %v430 = vpop.f32.mrb[0].mxu0
  %431 = vmatprep.mubr.f32.mxu0 0.0
  %432 = vmatmul.mubr.f32.gmra.mrb[0].mxu0 %v310
  %v433 = vpop.f32.mrb[0].mxu0
  %v434 = vadd.f32 0.0, %v433
  %v435 = vpop.f32.mrb[0].mxu0
  %436 = vmatprep.mubr.f32.mxu0 0.0
  %437 = vmatmul.mubr.f32.gmra.mrb[0].mxu0 %v313
  %v438 = vpop.f32.mrb[0].mxu0
  %v439 = vadd.f32 0.0, %v438
  %v440 = vpop.f32.mrb[0].mxu0
  %441 = vmatprep.mubr.f32.mxu0 0.0
  %442 = vmatmul.mubr.f32.gmra.mrb[0].mxu0 %v316
  %v443 = vpop.f32.mrb[0].mxu0
  %v444 = vadd.f32 0.0, %v443
  %v445 = vpop.f32.mrb[0].mxu0
  %446 = vmatprep.mubr.f32.mxu0 0.0
  %447 = vmatmul.mubr.f32.gmra.mrb[0].mxu0 %v319
  %v448 = vpop.f32.mrb[0].mxu0
  %v449 = vadd.f32 0.0, %v448
  %v450 = vpop.f32.mrb[0].mxu0
  %451 = vmatprep.mubr.f32.mxu0 0.0
  %452 = vmatmul.mubr.f32.gmra.mrb[0].mxu0 %v322
  %v453 = vpop.f32.mrb[0].mxu0
  %v454 = vadd.f32 0.0, %v453
  %v455 = vpop.f32.mrb[0].mxu0
  %456 = vmatprep.mubr.f32.mxu0 0.0
  %457 = vmatmul.mubr.f32.gmra.mrb[0].mxu0 %v325
  %v458 = vpop.f32.mrb[0].mxu0
  %v459 = vadd.f32 0.0, %v458
  %v460 = vpop.f32.mrb[0].mxu0
  %461 = vmatprep.mubr.f32.mxu0 0.0
  %462 = vmatmul.mubr.f32.gmra.mrb[0].mxu0 %v328
  %v463 = vpop.f32.mrb[0].mxu0
  %v464 = vadd.f32 0.0, %v463
  %v465 = vpop.f32.mrb[0].mxu0
  %466 = vmatprep.mubr.f32.mxu0 0.0
  %467 = vmatmul.mubr.f32.gmra.mrb[0].mxu0 %v331
  %v468 = vpop.f32.mrb[0].mxu0
  %v469 = vadd.f32 0.0, %v468
  %v470 = vpop.f32.mrb[0].mxu0
  %471 = vmatprep.mubr.f32.mxu0 0.0
  %472 = vmatmul.mubr.f32.gmra.mrb[0].mxu0 %v334
  %v473 = vpop.f32.mrb[0].mxu0
  %v474 = vadd.f32 0.0, %v473
  %v475 = vpop.f32.mrb[0].mxu0
  %476 = vmatprep.mubr.f32.mxu0 0.0
  %477 = vmatmul.mubr.f32.gmra.mrb[0].mxu0 %v337
  %v478 = vpop.f32.mrb[0].mxu0
  %v479 = vadd.f32 0.0, %v478
  %v480 = vpop.f32.mrb[0].mxu0
  %481 = vmatprep.mubr.f32.mxu0 0.0
  %482 = vmatmul.mubr.f32.gmra.mrb[0].mxu0 %v340
  %v483 = vpop.f32.mrb[0].mxu0
  %v484 = vadd.f32 0.0, %v483
  %v485 = vpop.f32.mrb[0].mxu0
  %486 = vdwg.mxu0
  %v488 = vsel %vm61, %v255, 0
  %v491 = vsel %vm61, %v256, 0
  %v494 = vsel %vm61, %v257, 0
  %v497 = vsel %vm61, %v258, 0
  %v500 = vsel %vm61, %v259, 0
  %v503 = vsel %vm61, %v260, 0
  %v506 = vsel %vm61, %v261, 0
  %v509 = vsel %vm61, %v262, 0
  %v512 = vsel %vm61, %v263, 0
  %v515 = vsel %vm61, %v264, 0
  %v518 = vsel %vm61, %v265, 0
  %v521 = vsel %vm61, %v266, 0
  %v524 = vsel %vm61, %v267, 0
  %v527 = vsel %vm61, %v268, 0
  %v530 = vsel %vm61, %v269, 0
  %v533 = vsel %vm61, %v270, 0
  %535 = vmatprep.subr.mxu0 0.0
  %536 = vmatpush1.msra.mxu0 %v271
  %537 = vmatprep.subr.mxu0 0.0
  %538 = vmatpush1.msra.mxu0 %v272
  %539 = vmatprep.subr.mxu0 0.0
  %540 = vmatpush1.msra.mxu0 %v273
  %541 = vmatprep.subr.mxu0 0.0
  %542 = vmatpush1.msra.mxu0 %v274
  %543 = vmatprep.subr.mxu0 0.0
  %544 = vmatpush1.msra.mxu0 0.0
  %545 = vmatprep.subr.mxu0 0.0
  %546 = vmatpush1.msra.mxu0 0.0
  %547 = vmatprep.subr.mxu0 0.0
  %548 = vmatpush1.msra.mxu0 0.0
  %549 = vmatprep.subr.mxu0 0.0
  %550 = vmatpush1.msra.mxu0 0.0
  %551 = vmatprep.subr.mxu0 0.0
  %552 = vmatpush1.msra.mxu0 0.0
  %553 = vmatprep.subr.mxu0 0.0
  %554 = vmatpush1.msra.mxu0 0.0
  %555 = vmatprep.subr.mxu0 0.0
  %556 = vmatpush1.msra.mxu0 0.0
  %557 = vmatprep.subr.mxu0 0.0
  %558 = vmatpush1.msra.mxu0 0.0
  %559 = vmatprep.subr.mxu0 0.0
  %560 = vmatpush1.msra.mxu0 0.0
  %561 = vmatprep.subr.mxu0 0.0
  %562 = vmatpush1.msra.mxu0 0.0
  %563 = vmatprep.subr.mxu0 0.0
  %564 = vmatpush1.msra.mxu0 0.0
  %565 = vmatprep.subr.mxu0 0.0
  %566 = vmatpush1.msra.mxu0 0.0
  %567 = vmatprep.subr.mxu0 0.0
  %568 = vmatpush1.msra.mxu0 0.0
  %569 = vmatprep.subr.mxu0 0.0
  %570 = vmatpush1.msra.mxu0 0.0
  %571 = vmatprep.subr.mxu0 0.0
  %572 = vmatpush1.msra.mxu0 0.0
  %573 = vmatprep.subr.mxu0 0.0
  %574 = vmatpush1.msra.mxu0 0.0
  %575 = vmatprep.subr.mxu0 0.0
  %576 = vmatpush1.msra.mxu0 0.0
  %577 = vmatprep.subr.mxu0 0.0
  %578 = vmatpush1.msra.mxu0 0.0
  %579 = vmatprep.subr.mxu0 0.0
  %580 = vmatpush1.msra.mxu0 0.0
  %581 = vmatprep.subr.mxu0 0.0
  %582 = vmatpush1.msra.mxu0 0.0
  %583 = vmatprep.subr.mxu0 0.0
  %584 = vmatpush1.msra.mxu0 0.0
  %585 = vmatprep.subr.mxu0 0.0
  %586 = vmatpush1.msra.mxu0 0.0
  %587 = vmatprep.subr.mxu0 0.0
  %588 = vmatpush1.msra.mxu0 0.0
  %589 = vmatprep.subr.mxu0 0.0
  %590 = vmatpush1.msra.mxu0 0.0
  %591 = vmatprep.subr.mxu0 0.0
  %592 = vmatpush1.msra.mxu0 0.0
  %593 = vmatprep.subr.mxu0 0.0
  %594 = vmatpush1.msra.mxu0 0.0
  %595 = vmatprep.subr.mxu0 0.0
  %596 = vmatpush1.msra.mxu0 0.0
  %597 = vmatprep.subr.mxu0 0.0
  %598 = vmatpush1.msra.mxu0 0.0
  %599 = vmatprep.mubr.f32.mxu0 0.0
  %600 = vmatmul.mubr.f32.gmra.mrb[0].mxu0 %v488
  %v601 = vpop.f32.mrb[0].mxu0
  %v602 = vadd.f32 %v409, %v601
  %v603 = vpop.f32.mrb[0].mxu0
  %604 = vmatprep.mubr.f32.mxu0 0.0
  %605 = vmatmul.mubr.f32.gmra.mrb[0].mxu0 %v491
  %v606 = vpop.f32.mrb[0].mxu0
  %v607 = vadd.f32 %v414, %v606
  %v608 = vpop.f32.mrb[0].mxu0
  %609 = vmatprep.mubr.f32.mxu0 0.0
  %610 = vmatmul.mubr.f32.gmra.mrb[0].mxu0 %v494
  %v611 = vpop.f32.mrb[0].mxu0
  %v612 = vadd.f32 %v419, %v611
  %v613 = vpop.f32.mrb[0].mxu0
  %614 = vmatprep.mubr.f32.mxu0 0.0
  %615 = vmatmul.mubr.f32.gmra.mrb[0].mxu0 %v497
  %v616 = vpop.f32.mrb[0].mxu0
  %v617 = vadd.f32 %v424, %v616
  %v618 = vpop.f32.mrb[0].mxu0
  %619 = vmatprep.mubr.f32.mxu0 0.0
  %620 = vmatmul.mubr.f32.gmra.mrb[0].mxu0 %v500
  %v621 = vpop.f32.mrb[0].mxu0
  %v622 = vadd.f32 %v429, %v621
  %v623 = vpop.f32.mrb[0].mxu0
  %624 = vmatprep.mubr.f32.mxu0 0.0
  %625 = vmatmul.mubr.f32.gmra.mrb[0].mxu0 %v503
  %v626 = vpop.f32.mrb[0].mxu0
  %v627 = vadd.f32 %v434, %v626
  %v628 = vpop.f32.mrb[0].mxu0
  %629 = vmatprep.mubr.f32.mxu0 0.0
  %630 = vmatmul.mubr.f32.gmra.mrb[0].mxu0 %v506
  %v631 = vpop.f32.mrb[0].mxu0
  %v632 = vadd.f32 %v439, %v631
  %v633 = vpop.f32.mrb[0].mxu0
  %634 = vmatprep.mubr.f32.mxu0 0.0
  %635 = vmatmul.mubr.f32.gmra.mrb[0].mxu0 %v509
  %v636 = vpop.f32.mrb[0].mxu0
  %v637 = vadd.f32 %v444, %v636
  %v638 = vpop.f32.mrb[0].mxu0
  %639 = vmatprep.mubr.f32.mxu0 0.0
  %640 = vmatmul.mubr.f32.gmra.mrb[0].mxu0 %v512
  %v641 = vpop.f32.mrb[0].mxu0
  %v642 = vadd.f32 %v449, %v641
  %v643 = vpop.f32.mrb[0].mxu0
  %644 = vmatprep.mubr.f32.mxu0 0.0
  %645 = vmatmul.mubr.f32.gmra.mrb[0].mxu0 %v515
  %v646 = vpop.f32.mrb[0].mxu0
  %v647 = vadd.f32 %v454, %v646
  %v648 = vpop.f32.mrb[0].mxu0
  %649 = vmatprep.mubr.f32.mxu0 0.0
  %650 = vmatmul.mubr.f32.gmra.mrb[0].mxu0 %v518
  %v651 = vpop.f32.mrb[0].mxu0
  %v652 = vadd.f32 %v459, %v651
  %v653 = vpop.f32.mrb[0].mxu0
  %654 = vmatprep.mubr.f32.mxu0 0.0
  %655 = vmatmul.mubr.f32.gmra.mrb[0].mxu0 %v521
  %v656 = vpop.f32.mrb[0].mxu0
  %v657 = vadd.f32 %v464, %v656
  %v658 = vpop.f32.mrb[0].mxu0
  %659 = vmatprep.mubr.f32.mxu0 0.0
  %660 = vmatmul.mubr.f32.gmra.mrb[0].mxu0 %v524
  %v661 = vpop.f32.mrb[0].mxu0
  %v662 = vadd.f32 %v469, %v661
  %v663 = vpop.f32.mrb[0].mxu0
  %664 = vmatprep.mubr.f32.mxu0 0.0
  %665 = vmatmul.mubr.f32.gmra.mrb[0].mxu0 %v527
  %v666 = vpop.f32.mrb[0].mxu0
  %v667 = vadd.f32 %v474, %v666
  %v668 = vpop.f32.mrb[0].mxu0
  %669 = vmatprep.mubr.f32.mxu0 0.0
  %670 = vmatmul.mubr.f32.gmra.mrb[0].mxu0 %v530
  %v671 = vpop.f32.mrb[0].mxu0
  %v672 = vadd.f32 %v479, %v671
  %v673 = vpop.f32.mrb[0].mxu0
  %674 = vmatprep.mubr.f32.mxu0 0.0
  %675 = vmatmul.mubr.f32.gmra.mrb[0].mxu0 %v533
  %v676 = vpop.f32.mrb[0].mxu0
  %v677 = vadd.f32 %v484, %v676
  %v678 = vpop.f32.mrb[0].mxu0
  %679 = vdwg.mxu0
  %v680 = vld [vmem:[%s6] sm:$0x1]
  %v682 = vlaneseq
  %v683 = vshrl.u32 %v682, 7
  %v684 = vsub.s32 0, %v683
  %v685 = vrot.slane %v680, %v684
  %v687 = vadd.f32 %v602, %v685
  %v688 = vadd.f32 %v607, %v685
  %v689 = vadd.f32 %v612, %v685
  %v690 = vadd.f32 %v617, %v685
  %v691 = vadd.f32 %v622, %v685
  %v692 = vadd.f32 %v627, %v685
  %v693 = vadd.f32 %v632, %v685
  %v694 = vadd.f32 %v637, %v685
  %v695 = vadd.f32 %v642, %v685
  %v696 = vadd.f32 %v647, %v685
  %v697 = vadd.f32 %v652, %v685
  %v698 = vadd.f32 %v657, %v685
  %v699 = vadd.f32 %v662, %v685
  %v700 = vadd.f32 %v667, %v685
  %v701 = vadd.f32 %v672, %v685
  %v702 = vadd.f32 %v677, %v685
  %v703 = vmax.f32 %v687, 0.0
  %v704 = vmax.f32 %v688, 0.0
  %v705 = vmax.f32 %v689, 0.0
  %v706 = vmax.f32 %v690, 0.0
  %v707 = vmax.f32 %v691, 0.0
  %v708 = vmax.f32 %v692, 0.0
  %v709 = vmax.f32 %v693, 0.0
  %v710 = vmax.f32 %v694, 0.0
  %v711 = vmax.f32 %v695, 0.0
  %v712 = vmax.f32 %v696, 0.0
  %v713 = vmax.f32 %v697, 0.0
  %v714 = vmax.f32 %v698, 0.0
  %v715 = vmax.f32 %v699, 0.0
  %v716 = vmax.f32 %v700, 0.0
  %v717 = vmax.f32 %v701, 0.0
  %v718 = vmax.f32 %v702, 0.0
  %v719 = vld [vmem:[%s7] sm:$0x1]
  %v721 = vlaneseq
  %v722 = vshrl.u32 %v721, 7
  %v723 = vsub.s32 0, %v722
  %v724 = vrot.slane %v719, %v723
  %v726 = vmul.f32 %v703, %v724
  %v727 = vmul.f32 %v704, %v724
  %v728 = vmul.f32 %v705, %v724
  %v729 = vmul.f32 %v706, %v724
  %v730 = vmul.f32 %v707, %v724
  %v731 = vmul.f32 %v708, %v724
  %v732 = vmul.f32 %v709, %v724
  %v733 = vmul.f32 %v710, %v724
  %v734 = vmul.f32 %v711, %v724
  %v735 = vmul.f32 %v712, %v724
  %v736 = vmul.f32 %v713, %v724
  %v737 = vmul.f32 %v714, %v724
  %v738 = vmul.f32 %v715, %v724
  %v739 = vmul.f32 %v716, %v724
  %v740 = vmul.f32 %v717, %v724
  %v741 = vmul.f32 %v718, %v724
  %v742 = vsel %vm61, %v726, 0.0
  %743 = vadd.xlane.f32.xlu0 %v742
  %v744 = vpop.xlane.xlu0 %743
  %v745 = vsel %vm61, %v727, 0.0
  %746 = vadd.xlane.f32.xlu0 %v745
  %v747 = vpop.xlane.xlu0 %746
  %v748 = vsel %vm61, %v728, 0.0
  %749 = vadd.xlane.f32.xlu0 %v748
  %v750 = vpop.xlane.xlu0 %749
  %v751 = vsel %vm61, %v729, 0.0
  %752 = vadd.xlane.f32.xlu0 %v751
  %v753 = vpop.xlane.xlu0 %752
  %v754 = vsel %vm61, %v730, 0.0
  %755 = vadd.xlane.f32.xlu0 %v754
  %v756 = vpop.xlane.xlu0 %755
  %v757 = vsel %vm61, %v731, 0.0
  %758 = vadd.xlane.f32.xlu0 %v757
  %v759 = vpop.xlane.xlu0 %758
  %v760 = vsel %vm61, %v732, 0.0
  %761 = vadd.xlane.f32.xlu0 %v760
  %v762 = vpop.xlane.xlu0 %761
  %v763 = vsel %vm61, %v733, 0.0
  %764 = vadd.xlane.f32.xlu0 %v763
  %v765 = vpop.xlane.xlu0 %764
  %v766 = vsel %vm61, %v734, 0.0
  %767 = vadd.xlane.f32.xlu0 %v766
  %v768 = vpop.xlane.xlu0 %767
  %v769 = vsel %vm61, %v735, 0.0
  %770 = vadd.xlane.f32.xlu0 %v769
  %v771 = vpop.xlane.xlu0 %770
  %v772 = vsel %vm61, %v736, 0.0
  %773 = vadd.xlane.f32.xlu0 %v772
  %v774 = vpop.xlane.xlu0 %773
  %v775 = vsel %vm61, %v737, 0.0
  %776 = vadd.xlane.f32.xlu0 %v775
  %v777 = vpop.xlane.xlu0 %776
  %v778 = vsel %vm61, %v738, 0.0
  %779 = vadd.xlane.f32.xlu0 %v778
  %v780 = vpop.xlane.xlu0 %779
  %v781 = vsel %vm61, %v739, 0.0
  %782 = vadd.xlane.f32.xlu0 %v781
  %v783 = vpop.xlane.xlu0 %782
  %v784 = vsel %vm61, %v740, 0.0
  %785 = vadd.xlane.f32.xlu0 %v784
  %v786 = vpop.xlane.xlu0 %785
  %v787 = vsel %vm61, %v741, 0.0
  %788 = vadd.xlane.f32.xlu0 %v787
  %v789 = vpop.xlane.xlu0 %788
  %v790 = vld [vmem:[#allocation2] sm:$0x1]
  %v792 = vlaneseq
  %v793 = vshrl.u32 %v792, 7
  %v794 = vsub.s32 0, %v793
  %v795 = vrot.slane %v790, %v794
  %v797 = vadd.f32 %v744, %v795
  %v798 = vadd.f32 %v747, %v795
  %v799 = vadd.f32 %v750, %v795
  %v800 = vadd.f32 %v753, %v795
  %v801 = vadd.f32 %v756, %v795
  %v802 = vadd.f32 %v759, %v795
  %v803 = vadd.f32 %v762, %v795
  %v804 = vadd.f32 %v765, %v795
  %v805 = vadd.f32 %v768, %v795
  %v806 = vadd.f32 %v771, %v795
  %v807 = vadd.f32 %v774, %v795
  %v808 = vadd.f32 %v777, %v795
  %v809 = vadd.f32 %v780, %v795
  %v810 = vadd.f32 %v783, %v795
  %v811 = vadd.f32 %v786, %v795
  %v812 = vadd.f32 %v789, %v795
  %vm813 = vcmask 7168
  %814 = vst.msk [vmem:[%s9] sm:$0xff] %vm813, %v797
  %815 = vst.msk [vmem:[%s9 + $0x8] sm:$0xff] %vm813, %v798
  %816 = vst.msk [vmem:[%s9 + $0x10] sm:$0xff] %vm813, %v799
  %817 = vst.msk [vmem:[%s9 + $0x18] sm:$0xff] %vm813, %v800
  %818 = vst.msk [vmem:[%s9 + $0x20] sm:$0xff] %vm813, %v801
  %819 = vst.msk [vmem:[%s9 + $0x28] sm:$0xff] %vm813, %v802
  %820 = vst.msk [vmem:[%s9 + $0x30] sm:$0xff] %vm813, %v803
  %821 = vst.msk [vmem:[%s9 + $0x38] sm:$0xff] %vm813, %v804
  %822 = vst.msk [vmem:[%s9 + $0x40] sm:$0xff] %vm813, %v805
  %823 = vst.msk [vmem:[%s9 + $0x48] sm:$0xff] %vm813, %v806
  %824 = vst.msk [vmem:[%s9 + $0x50] sm:$0xff] %vm813, %v807
  %825 = vst.msk [vmem:[%s9 + $0x58] sm:$0xff] %vm813, %v808
  %826 = vst.msk [vmem:[%s9 + $0x60] sm:$0xff] %vm813, %v809
  %827 = vst.msk [vmem:[%s9 + $0x68] sm:$0xff] %vm813, %v810
  %828 = vst.msk [vmem:[%s9 + $0x70] sm:$0xff] %vm813, %v811
  %829 = vst.msk [vmem:[%s9 + $0x78] sm:$0xff] %vm813, %v812
  // Predicated region
  $region38: #{tpu_custom_call.1} parent=0 // pred_check
    _
  $region39: #{tpu_custom_call.1} parent=0 // pred_check_branch
    %831 = sbr.rel (0) target = $region41
  $region40: #{tpu_custom_call.1} parent=0 // pred_region
    _
  $region41: #{tpu_custom_call.1} parent=0 // pred_fallthru
    _
  // Predicated region
  $region42: #{tpu_custom_call.1} parent=0 // pred_check
    _
  $region43: #{tpu_custom_call.1} parent=0 // pred_check_branch
    %833 = sbr.rel (0) target = $region45
  $region44: #{tpu_custom_call.1} parent=0 // pred_region
    _
  $region45: #{tpu_custom_call.1} parent=0 // pred_fallthru
    _

</llo_original>
